<compile_context>
chip_gen: v5e
topology: v5e:2x2
jax: 0.10.0
libtpu: 0.0.40
codegen_flags: <defaults>
</compile_context>

<pallas_src>
import jax
import jax.numpy as jnp
from jax.experimental import pallas as pl
from jax.experimental.pallas import tpu as pltpu


def _round_up(x, m):
    return (x + m - 1) // m * m


# ---------------------------------------------------------------------------
# Pallas kernel 1: tiled GEMM (no bias)  o = x @ w
#   grid = (M/tm, N/tn, K/tk), f32 accumulator in VMEM, store on last K step.
# ---------------------------------------------------------------------------
def _gemm_kernel(x_ref, w_ref, o_ref, acc_ref):
    @pl.when(pl.program_id(2) == 0)
    def _init():
        acc_ref[...] = jnp.zeros_like(acc_ref)

    acc_ref[...] += jnp.dot(x_ref[...], w_ref[...],
                            preferred_element_type=jnp.float32)

    @pl.when(pl.program_id(2) == pl.num_programs(2) - 1)
    def _store():
        o_ref[...] = acc_ref[...].astype(o_ref.dtype)


def pallas_gemm(x, w, *, tm=256, tn=128, tk_max=2048):
    """x: (M, K) f32, w: (K, N) f32 -> (M, N) f32.

    Pads M to sublane multiples, N/K to lane multiples (128), streams bf16.
    """
    M, K = x.shape
    K2, N = w.shape
    assert K == K2

    Mp = _round_up(M, 8)
    tm = min(tm, Mp)
    Mp = _round_up(Mp, tm)

    Np = _round_up(N, tn)

    Kp0 = _round_up(K, 128)
    tk = Kp0 if Kp0 <= tk_max else tk_max
    Kp = _round_up(K, tk)

    xb = jnp.zeros((Mp, Kp), jnp.bfloat16).at[:M, :K].set(x.astype(jnp.bfloat16))
    wb = jnp.zeros((Kp, Np), jnp.bfloat16).at[:K, :N].set(w.astype(jnp.bfloat16))

    out = pl.pallas_call(
        _gemm_kernel,
        out_shape=jax.ShapeDtypeStruct((Mp, Np), jnp.float32),
        grid_spec=pltpu.PrefetchScalarGridSpec(
            num_scalar_prefetch=0,
            grid=(Mp // tm, Np // tn, Kp // tk),
            in_specs=[
                pl.BlockSpec((tm, tk), lambda i, j, k: (i, k)),
                pl.BlockSpec((tk, tn), lambda i, j, k: (k, j)),
            ],
            out_specs=pl.BlockSpec((tm, tn), lambda i, j, k: (i, j)),
            scratch_shapes=[pltpu.VMEM((tm, tn), jnp.float32)],
        ),
        compiler_params=pltpu.CompilerParams(
            dimension_semantics=("parallel", "parallel", "arbitrary"),
            vmem_limit_bytes=32 * 1024 * 1024,
        ),
    )(xb, wb)
    return out[:M, :N]


# ---------------------------------------------------------------------------
# Pallas kernel 2: fused Linear1 + Linear2
#   out = (x @ w1 + b1) @ w2 + b2
#   grid = (K/tk,), hidden h kept in VMEM scratch across the reduction;
#   second (256 x 128-padded) matmul + both bias adds happen on the last step.
# ---------------------------------------------------------------------------
def _fused_mlp_kernel(x_ref, w1_ref, b1_ref, w2_ref, b2_ref, o_ref, acc_ref):
    k = pl.program_id(0)

    @pl.when(k == 0)
    def _init():
        acc_ref[...] = jnp.zeros_like(acc_ref)

    acc_ref[...] += jnp.dot(x_ref[...], w1_ref[...],
                            preferred_element_type=jnp.float32)

    @pl.when(k == pl.num_programs(0) - 1)
    def _finalize():
        h = acc_ref[...] + b1_ref[...]                      # (Mp, 256) f32
        out = jnp.dot(h, w2_ref[...],
                      preferred_element_type=jnp.float32) + b2_ref[...]
        o_ref[...] = out.astype(o_ref.dtype)                # lane-dense (Mp, 128)


def pallas_fused_mlp(flat, w1t, b1, w2t, b2, *, tk=2048):
    """flat: (M, K), w1t: (K, 256), b1: (256,), w2t: (256, Nout), b2: (Nout,)."""
    M, K = flat.shape
    K2, N1 = w1t.shape
    N1b, N2 = w2t.shape
    assert K == K2 and N1 == N1b

    Mp = _round_up(M, 8)
    Kp0 = _round_up(K, 128)
    tk = min(tk, Kp0)
    Kp = _round_up(K, tk)
    N2p = _round_up(max(N2, 128), 128)   # pad 3 -> 128 so the store is unmasked

    xb = jnp.zeros((Mp, Kp), jnp.bfloat16).at[:M, :K].set(flat.astype(jnp.bfloat16))
    w1b = jnp.zeros((Kp, N1), jnp.bfloat16).at[:K].set(w1t.astype(jnp.bfloat16))
    b1r = b1.reshape(1, N1).astype(jnp.float32)
    w2p = jnp.zeros((N1, N2p), jnp.float32).at[:, :N2].set(w2t.astype(jnp.float32))
    b2p = jnp.zeros((1, N2p), jnp.float32).at[0, :N2].set(b2.astype(jnp.float32))

    out = pl.pallas_call(
        _fused_mlp_kernel,
        out_shape=jax.ShapeDtypeStruct((Mp, N2p), jnp.float32),
        grid_spec=pltpu.PrefetchScalarGridSpec(
            num_scalar_prefetch=0,
            grid=(Kp // tk,),
            in_specs=[
                pl.BlockSpec((Mp, tk), lambda k: (0, k)),     # activations
                pl.BlockSpec((tk, N1), lambda k: (k, 0)),     # w1 stream (dominant)
                pl.BlockSpec((1, N1), lambda k: (0, 0)),      # b1 (resident)
                pl.BlockSpec((N1, N2p), lambda k: (0, 0)),    # w2 (resident)
                pl.BlockSpec((1, N2p), lambda k: (0, 0)),     # b2 (resident)
            ],
            out_specs=pl.BlockSpec((Mp, N2p), lambda k: (0, 0)),
            scratch_shapes=[pltpu.VMEM((Mp, N1), jnp.float32)],
        ),
        compiler_params=pltpu.CompilerParams(
            dimension_semantics=("arbitrary",),
            vmem_limit_bytes=32 * 1024 * 1024,
        ),
    )(xb, w1b, b1r, w2p, b2p)
    return out[:M, :N2]


# ---------------------------------------------------------------------------
# Glue: im2col patch extraction for the strided conv (pure indexing/reshape)
# ---------------------------------------------------------------------------
def im2col(x, k=3, stride=2, pad=1):
    # x: (N, C, H, W)  ->  cols: (N*OH*OW, C*k*k), rows in (n, oh, ow) order.
    N, C, H, W = x.shape
    xp = jnp.pad(x, ((0, 0), (0, 0), (pad, pad), (pad, pad)))
    OH = (H + 2 * pad - k) // stride + 1
    OW = (W + 2 * pad - k) // stride + 1
    patches = []
    for i in range(k):
        for j in range(k):
            patches.append(
                xp[:, :, i: i + stride * OH: stride, j: j + stride * OW: stride]
            )  # (N, C, OH, OW)
    cols = jnp.stack(patches, axis=2)                 # (N, C, k*k, OH, OW)
    cols = cols.transpose(0, 3, 4, 1, 2)              # (N, OH, OW, C, k*k)
    cols = cols.reshape(N * OH * OW, C * k * k)       # c outer, (i*k + j) inner
    return cols, OH, OW


# ---------------------------------------------------------------------------
# Full forward
# ---------------------------------------------------------------------------
def inception_forward(x, params):
    N, C, H, W = x.shape

    # --- conv_layer: Conv2d(1, 32, k=3, s=2, p=1, bias=False) via im2col GEMM
    cols, OH, OW = im2col(x, k=3, stride=2, pad=1)            # (N*OH*OW, 9)
    w_conv = params["conv_w"].reshape(32, C * 3 * 3).T        # (9, 32)
    conv = pallas_gemm(cols, w_conv)                          # (N*OH*OW, 32)
    conv_nhwc = conv.reshape(N, OH, OW, 32)                   # stay NHWC (no transpose)

    # --- inception_layer: identity (architecture unavailable, see TODO above)
    feat = conv_nhwc

    # --- flatten in NHWC order + permute w1's rows so the result equals the
    #     PyTorch NCHW flatten (x.view(x.size(0), -1)) applied to the NCHW map.
    flat = feat.reshape(N, OH * OW * 32)                      # (N, 32*OH*OW)
    w1_nhwc = (params["w1"]
               .reshape(256, 32, OH, OW)
               .transpose(0, 2, 3, 1)
               .reshape(256, OH * OW * 32))

    # --- Linear_layer1 + Linear_layer2 fused (dropout p=0.5: eval-mode identity)
    out = pallas_fused_mlp(flat, w1_nhwc.T, params["b1"],
                           params["w2"].T, params["b2"], tk=512)
    return out                                                # (N, 3)


# Pure-JAX reference with the exact PyTorch semantics (NCHW flatten, f32 math).
def reference_forward(x, params):
    N, C, H, W = x.shape
    cols, OH, OW = im2col(x, k=3, stride=2, pad=1)
    w_conv = params["conv_w"].reshape(32, C * 9).T
    conv = (cols @ w_conv).reshape(N, OH, OW, 32)
    flat = conv.transpose(0, 3, 1, 2).reshape(N, -1)          # NCHW flatten
    h = flat @ params["w1"].T + params["b1"]
    return h @ params["w2"].T + params["b2"]


# ---------------------------------------------------------------------------
# Deterministic parameter init (synthetic, matches layer shapes)
# ---------------------------------------------------------------------------
def init_params(key, flat_dim):
    k0, k1, k2, k3, k4 = jax.random.split(key, 5)
    return {
        # Conv2d(1, 32, 3, 3) weight, PyTorch layout (out, in, kH, kW)
        "conv_w": jax.random.normal(k0, (32, 1, 3, 3), jnp.float32) * 0.1,
        # Linear(flat_dim, 256): weight (out, in), bias (out,)
        "w1": jax.random.normal(k1, (256, flat_dim), jnp.float32) * 0.02,
        "b1": jax.random.normal(k2, (256,), jnp.float32) * 0.01,
        # Linear(256, 3)
        "w2": jax.random.normal(k3, (3, 256), jnp.float32) * 0.02,
        "b2": jax.random.normal(k4, (3,), jnp.float32) * 0.01,
    }


if __name__ == "__main__":
    key = jax.random.PRNGKey(0)
    kx, kp = jax.random.split(key)

    # Small test shape consistent with the module: NCHW, 1 input channel.
    N, C, H, W = 2, 1, 16, 16
    x = jax.random.normal(kx, (N, C, H, W), jnp.float32)

    OH = (H + 2 - 3) // 2 + 1
    OW = (W + 2 - 3) // 2 + 1
    flat_dim = 32 * OH * OW   # 2048 (stands in for 739328 at full resolution)

    params = init_params(kp, flat_dim)

    fwd = jax.jit(inception_forward)
    out = fwd(x, params)
    jax.block_until_ready(out)

    ref = reference_forward(x, params)
    assert out.shape == (N, 3), out.shape
    assert bool(jnp.allclose(out, ref, atol=1e-2, rtol=1e-2)), \
        float(jnp.max(jnp.abs(out - ref)))
    print("KERNEL_OK")
</pallas_src>

<mosaic_0001>
module attributes {stable_mosaic.version = 11 : i64} {
  func.func @_gemm_kernel(%arg0: i32, %arg1: i32, %arg2: i32, %arg3: memref<128x128xbf16, #tpu.memory_space<vmem>>, %arg4: memref<128x128xbf16, #tpu.memory_space<vmem>>, %arg5: memref<128x128xf32, #tpu.memory_space<vmem>>, %arg6: memref<128x128xf32, #tpu.memory_space<vmem>>) attributes {dimension_semantics = [#tpu.dimension_semantics<parallel>, #tpu.dimension_semantics<parallel>, #tpu.dimension_semantics<arbitrary>], iteration_bounds = array<i64: 1, 1, 1>, scalar_prefetch = 0 : i64, scratch_operands = 1 : i64, tpu.core_type = #tpu.core_type<tc>, window_params = [{transform_indices = @transform_0, window_bounds = array<i64: 128, 128>}, {transform_indices = @transform_1, window_bounds = array<i64: 128, 128>}, {transform_indices = @transform_2, window_bounds = array<i64: 128, 128>}]} {
    %c0_i32 = arith.constant 0 : i32
    %0 = arith.cmpi eq, %arg2, %c0_i32 : i32
    %1 = arith.extui %0 : i1 to i32
    %c0_i32_0 = arith.constant 0 : i32
    %2 = arith.cmpi ne, %1, %c0_i32_0 : i32
    scf.if %2 {
      %cst_10 = arith.constant 0.000000e+00 : f32
      %12 = vector.broadcast %cst_10 : f32 to vector<128x128xf32>
      %c0_11 = arith.constant 0 : index
      %c0_12 = arith.constant 0 : index
      %13 = vector.load %arg6[%c0_11, %c0_12] : memref<128x128xf32, #tpu.memory_space<vmem>>, vector<128x128xf32>
      tpu.vector_store %arg6[%c0_11, %c0_12], %12 {strides = array<i32>} : memref<128x128xf32, #tpu.memory_space<vmem>>, vector<128x128xf32>,
    } else {
    }
    %c0 = arith.constant 0 : index
    %c0_1 = arith.constant 0 : index
    %3 = vector.load %arg6[%c0, %c0_1] : memref<128x128xf32, #tpu.memory_space<vmem>>, vector<128x128xf32>
    %c0_2 = arith.constant 0 : index
    %c0_3 = arith.constant 0 : index
    %4 = vector.load %arg3[%c0_2, %c0_3] : memref<128x128xbf16, #tpu.memory_space<vmem>>, vector<128x128xbf16>
    %c0_4 = arith.constant 0 : index
    %c0_5 = arith.constant 0 : index
    %5 = vector.load %arg4[%c0_4, %c0_5] : memref<128x128xbf16, #tpu.memory_space<vmem>>, vector<128x128xbf16>
    %cst = arith.constant dense<0.000000e+00> : vector<128x128xf32>
    %6 = tpu.matmul %4, %5, %cst {dimension_numbers = #tpu.dot_dimension_numbers<[1], [0], [0], [1], [0, 0, 1, 1], [], []>} : vector<128x128xbf16>, vector<128x128xbf16>, vector<128x128xf32> -> vector<128x128xf32>
    %7 = arith.addf %3, %6 : vector<128x128xf32>
    %c0_6 = arith.constant 0 : index
    %c0_7 = arith.constant 0 : index
    %8 = vector.load %arg6[%c0_6, %c0_7] : memref<128x128xf32, #tpu.memory_space<vmem>>, vector<128x128xf32>
    tpu.vector_store %arg6[%c0_6, %c0_7], %7 {strides = array<i32>} : memref<128x128xf32, #tpu.memory_space<vmem>>, vector<128x128xf32>,
    %c0_i32_8 = arith.constant 0 : i32
    %9 = arith.cmpi eq, %arg2, %c0_i32_8 : i32
    %10 = arith.extui %9 : i1 to i32
    %c0_i32_9 = arith.constant 0 : i32
    %11 = arith.cmpi ne, %10, %c0_i32_9 : i32
    scf.if %11 {
      %c0_10 = arith.constant 0 : index
      %c0_11 = arith.constant 0 : index
      %12 = vector.load %arg6[%c0_10, %c0_11] : memref<128x128xf32, #tpu.memory_space<vmem>>, vector<128x128xf32>
      %c0_12 = arith.constant 0 : index
      %c0_13 = arith.constant 0 : index
      %13 = vector.load %arg5[%c0_12, %c0_13] : memref<128x128xf32, #tpu.memory_space<vmem>>, vector<128x128xf32>
      tpu.vector_store %arg5[%c0_12, %c0_13], %12 {strides = array<i32>} : memref<128x128xf32, #tpu.memory_space<vmem>>, vector<128x128xf32>,
    } else {
    }
    return
  }
  func.func @transform_0(%arg0: i32, %arg1: i32, %arg2: i32) -> (i32, i32) {
    %c0_i32 = arith.constant 0 : i32
    return %arg0, %arg2 : i32, i32
  }
  func.func @transform_1(%arg0: i32, %arg1: i32, %arg2: i32) -> (i32, i32) {
    %c0_i32 = arith.constant 0 : i32
    return %arg2, %arg1 : i32, i32
  }
  func.func @transform_2(%arg0: i32, %arg1: i32, %arg2: i32) -> (i32, i32) {
    %c0_i32 = arith.constant 0 : i32
    return %arg0, %arg1 : i32, i32
  }
}

module attributes {stable_mosaic.version = 11 : i64} {
  func.func @_fused_mlp_kernel(%arg0: i32, %arg1: memref<8x512xbf16, #tpu.memory_space<vmem>>, %arg2: memref<512x256xbf16, #tpu.memory_space<vmem>>, %arg3: memref<1x256xf32, #tpu.memory_space<vmem>>, %arg4: memref<256x128xf32, #tpu.memory_space<vmem>>, %arg5: memref<1x128xf32, #tpu.memory_space<vmem>>, %arg6: memref<8x128xf32, #tpu.memory_space<vmem>>, %arg7: memref<8x256xf32, #tpu.memory_space<vmem>>) attributes {dimension_semantics = [#tpu.dimension_semantics<arbitrary>], iteration_bounds = array<i64: 4>, scalar_prefetch = 0 : i64, scratch_operands = 1 : i64, tpu.core_type = #tpu.core_type<tc>, window_params = [{transform_indices = @transform_0, window_bounds = array<i64: 8, 512>}, {transform_indices = @transform_1, window_bounds = array<i64: 512, 256>}, {pipeline_mode = #tpu.pipeline_mode<synchronous>, transform_indices = @transform_2, window_bounds = array<i64: 1, 256>}, {pipeline_mode = #tpu.pipeline_mode<synchronous>, transform_indices = @transform_3, window_bounds = array<i64: 256, 128>}, {pipeline_mode = #tpu.pipeline_mode<synchronous>, transform_indices = @transform_4, window_bounds = array<i64: 1, 128>}, {pipeline_mode = #tpu.pipeline_mode<synchronous>, transform_indices = @transform_5, window_bounds = array<i64: 8, 128>}]} {
    %c0_i32 = arith.constant 0 : i32
    %0 = arith.cmpi eq, %arg0, %c0_i32 : i32
    %1 = arith.extui %0 : i1 to i32
    %c0_i32_0 = arith.constant 0 : i32
    %2 = arith.cmpi ne, %1, %c0_i32_0 : i32
    scf.if %2 {
      %cst_9 = arith.constant 0.000000e+00 : f32
      %12 = vector.broadcast %cst_9 : f32 to vector<8x256xf32>
      %c0_10 = arith.constant 0 : index
      %c0_11 = arith.constant 0 : index
      %13 = vector.load %arg7[%c0_10, %c0_11] : memref<8x256xf32, #tpu.memory_space<vmem>>, vector<8x256xf32>
      tpu.vector_store %arg7[%c0_10, %c0_11], %12 {strides = array<i32>} : memref<8x256xf32, #tpu.memory_space<vmem>>, vector<8x256xf32>,
    } else {
    }
    %c0 = arith.constant 0 : index
    %c0_1 = arith.constant 0 : index
    %3 = vector.load %arg7[%c0, %c0_1] : memref<8x256xf32, #tpu.memory_space<vmem>>, vector<8x256xf32>
    %c0_2 = arith.constant 0 : index
    %c0_3 = arith.constant 0 : index
    %4 = vector.load %arg1[%c0_2, %c0_3] : memref<8x512xbf16, #tpu.memory_space<vmem>>, vector<8x512xbf16>
    %c0_4 = arith.constant 0 : index
    %c0_5 = arith.constant 0 : index
    %5 = vector.load %arg2[%c0_4, %c0_5] : memref<512x256xbf16, #tpu.memory_space<vmem>>, vector<512x256xbf16>
    %cst = arith.constant dense<0.000000e+00> : vector<8x256xf32>
    %6 = tpu.matmul %4, %5, %cst {dimension_numbers = #tpu.dot_dimension_numbers<[1], [0], [0], [1], [0, 0, 1, 1], [], []>} : vector<8x512xbf16>, vector<512x256xbf16>, vector<8x256xf32> -> vector<8x256xf32>
    %7 = arith.addf %3, %6 : vector<8x256xf32>
    %c0_6 = arith.constant 0 : index
    %c0_7 = arith.constant 0 : index
    %8 = vector.load %arg7[%c0_6, %c0_7] : memref<8x256xf32, #tpu.memory_space<vmem>>, vector<8x256xf32>
    tpu.vector_store %arg7[%c0_6, %c0_7], %7 {strides = array<i32>} : memref<8x256xf32, #tpu.memory_space<vmem>>, vector<8x256xf32>,
    %c3_i32 = arith.constant 3 : i32
    %9 = arith.cmpi eq, %arg0, %c3_i32 : i32
    %10 = arith.extui %9 : i1 to i32
    %c0_i32_8 = arith.constant 0 : i32
    %11 = arith.cmpi ne, %10, %c0_i32_8 : i32
    scf.if %11 {
      %c0_9 = arith.constant 0 : index
      %c0_10 = arith.constant 0 : index
      %12 = vector.load %arg7[%c0_9, %c0_10] : memref<8x256xf32, #tpu.memory_space<vmem>>, vector<8x256xf32>
      %c0_11 = arith.constant 0 : index
      %c0_12 = arith.constant 0 : index
      %13 = vector.load %arg3[%c0_11, %c0_12] : memref<1x256xf32, #tpu.memory_space<vmem>>, vector<1x256xf32>
      %14 = vector.broadcast %13 : vector<1x256xf32> to vector<8x256xf32>
      %15 = arith.addf %12, %14 : vector<8x256xf32>
      %c0_13 = arith.constant 0 : index
      %c0_14 = arith.constant 0 : index
      %16 = vector.load %arg4[%c0_13, %c0_14] : memref<256x128xf32, #tpu.memory_space<vmem>>, vector<256x128xf32>
      %cst_15 = arith.constant dense<0.000000e+00> : vector<8x128xf32>
      %17 = tpu.matmul %15, %16, %cst_15 {dimension_numbers = #tpu.dot_dimension_numbers<[1], [0], [0], [1], [0, 0, 1, 1], [], []>} : vector<8x256xf32>, vector<256x128xf32>, vector<8x128xf32> -> vector<8x128xf32>
      %c0_16 = arith.constant 0 : index
      %c0_17 = arith.constant 0 : index
      %18 = vector.load %arg5[%c0_16, %c0_17] : memref<1x128xf32, #tpu.memory_space<vmem>>, vector<1x128xf32>
      %19 = vector.broadcast %18 : vector<1x128xf32> to vector<8x128xf32>
      %20 = arith.addf %17, %19 : vector<8x128xf32>
      %c0_18 = arith.constant 0 : index
      %c0_19 = arith.constant 0 : index
      %21 = vector.load %arg6[%c0_18, %c0_19] : memref<8x128xf32, #tpu.memory_space<vmem>>, vector<8x128xf32>
      tpu.vector_store %arg6[%c0_18, %c0_19], %20 {strides = array<i32>} : memref<8x128xf32, #tpu.memory_space<vmem>>, vector<8x128xf32>,
    } else {
    }
    return
  }
  func.func @transform_0(%arg0: i32) -> (i32, i32) {
    %c0_i32 = arith.constant 0 : i32
    %c0_i32_0 = arith.constant 0 : i32
    return %c0_i32, %arg0 : i32, i32
  }
  func.func @transform_1(%arg0: i32) -> (i32, i32) {
    %c0_i32 = arith.constant 0 : i32
    %c0_i32_0 = arith.constant 0 : i32
    return %arg0, %c0_i32 : i32, i32
  }
  func.func @transform_2(%arg0: i32) -> (i32, i32) {
    %c0_i32 = arith.constant 0 : i32
    %c0_i32_0 = arith.constant 0 : i32
    %c0_i32_1 = arith.constant 0 : i32
    return %c0_i32, %c0_i32_0 : i32, i32
  }
  func.func @transform_3(%arg0: i32) -> (i32, i32) {
    %c0_i32 = arith.constant 0 : i32
    %c0_i32_0 = arith.constant 0 : i32
    %c0_i32_1 = arith.constant 0 : i32
    return %c0_i32, %c0_i32_0 : i32, i32
  }
  func.func @transform_4(%arg0: i32) -> (i32, i32) {
    %c0_i32 = arith.constant 0 : i32
    %c0_i32_0 = arith.constant 0 : i32
    %c0_i32_1 = arith.constant 0 : i32
    return %c0_i32, %c0_i32_0 : i32, i32
  }
  func.func @transform_5(%arg0: i32) -> (i32, i32) {
    %c0_i32 = arith.constant 0 : i32
    %c0_i32_0 = arith.constant 0 : i32
    %c0_i32_1 = arith.constant 0 : i32
    return %c0_i32, %c0_i32_0 : i32, i32
  }
}

</mosaic_0001>

<llo_original>
// kernel: inception_forward.2
$region0: #{inception_forward.2}
  #allocation0 [shape = 'u32[]', space=smem, size = 0x4, offset = 0x4, fixed_abs, tag = 'smem constant byte address 0x4 - core index']
  #allocation1 [shape = 'u32[72,128]{1,0:T(1,128)}', space=vmem, size = 0x9000, scoped, tag = 'internal scratch']
  #allocation2 [shape = 'f32[128,128]{1,0:T(8,128)}', space=vmem, size = 0x10000, scoped, tag = 'scratch operand']
  %s0 = inlined_call_operand.vmem [shape: bf16[128,128], index: 0, kind: input, shape index: {}]
  %s1 = inlined_call_operand.vmem [shape: bf16[128,128], index: 1, kind: input, shape index: {}]
  %s2 = inlined_call_operand.vmem [shape: f32[128,128], index: 2, kind: output, shape index: {}]
  %s3 = sld [smem:[#allocation0]]
  $region26: #{inception_forward.2} parent=0
    _
  %s5 = ssub.s32 1, %s3
  %s6 = scalar_select 0, %s5, %s3
  // Predicated region
  $region2: #{inception_forward.2} parent=0 // pred_check
    _
  $region3: #{inception_forward.2} parent=0 // pred_check_branch
    %8 = sbr.rel (0) target = $region5
  $region4: #{inception_forward.2} parent=0 // pred_region
    _
  $region5: #{inception_forward.2} parent=0 // pred_fallthru
    _
  // Predicated region
  $region6: #{inception_forward.2} parent=0 // pred_check
    _
  $region7: #{inception_forward.2} parent=0 // pred_check_branch
    %10 = sbr.rel (0) target = $region9
  $region8: #{inception_forward.2} parent=0 // pred_region
    _
  $region9: #{inception_forward.2} parent=0 // pred_fallthru
    _
  %p11 = scmp.eq.s32.totalorder 0, 0
  // Predicated region
  $region10: #{inception_forward.2} parent=0 // pred_check
    %p12 = pneg %p11
  $region11: #{inception_forward.2} parent=0 // pred_check_branch
    %14 = sbr.rel (%p12) target = $region13
  $region12: #{inception_forward.2} parent=0 // pred_region
    %15 = vst [vmem:[#allocation2] sm:$0xff] 0.0
    %16 = vst [vmem:[#allocation2 + $0x8] sm:$0xff] 0.0
    %17 = vst [vmem:[#allocation2 + $0x10] sm:$0xff] 0.0
    %18 = vst [vmem:[#allocation2 + $0x18] sm:$0xff] 0.0
    %19 = vst [vmem:[#allocation2 + $0x20] sm:$0xff] 0.0
    %20 = vst [vmem:[#allocation2 + $0x28] sm:$0xff] 0.0
    %21 = vst [vmem:[#allocation2 + $0x30] sm:$0xff] 0.0
    %22 = vst [vmem:[#allocation2 + $0x38] sm:$0xff] 0.0
    %23 = vst [vmem:[#allocation2 + $0x40] sm:$0xff] 0.0
    %24 = vst [vmem:[#allocation2 + $0x48] sm:$0xff] 0.0
    %25 = vst [vmem:[#allocation2 + $0x50] sm:$0xff] 0.0
    %26 = vst [vmem:[#allocation2 + $0x58] sm:$0xff] 0.0
    %27 = vst [vmem:[#allocation2 + $0x60] sm:$0xff] 0.0
    %28 = vst [vmem:[#allocation2 + $0x68] sm:$0xff] 0.0
    %29 = vst [vmem:[#allocation2 + $0x70] sm:$0xff] 0.0
    %30 = vst [vmem:[#allocation2 + $0x78] sm:$0xff] 0.0
  $region13: #{inception_forward.2} parent=0 // pred_fallthru
    _
  %v31 = vld [vmem:[#allocation2] sm:$0xff]
  %v32 = vld [vmem:[#allocation2 + $0x8] sm:$0xff]
  %v33 = vld [vmem:[#allocation2 + $0x10] sm:$0xff]
  %v34 = vld [vmem:[#allocation2 + $0x18] sm:$0xff]
  %v35 = vld [vmem:[#allocation2 + $0x20] sm:$0xff]
  %v36 = vld [vmem:[#allocation2 + $0x28] sm:$0xff]
  %v37 = vld [vmem:[#allocation2 + $0x30] sm:$0xff]
  %v38 = vld [vmem:[#allocation2 + $0x38] sm:$0xff]
  %v39 = vld [vmem:[#allocation2 + $0x40] sm:$0xff]
  %v40 = vld [vmem:[#allocation2 + $0x48] sm:$0xff]
  %v41 = vld [vmem:[#allocation2 + $0x50] sm:$0xff]
  %v42 = vld [vmem:[#allocation2 + $0x58] sm:$0xff]
  %v43 = vld [vmem:[#allocation2 + $0x60] sm:$0xff]
  %v44 = vld [vmem:[#allocation2 + $0x68] sm:$0xff]
  %v45 = vld [vmem:[#allocation2 + $0x70] sm:$0xff]
  %v46 = vld [vmem:[#allocation2 + $0x78] sm:$0xff]
  %v47 = vld [vmem:[%s0] sm:$0xf]
  %v48 = vld [vmem:[%s0 + $0x4] sm:$0xf]
  %v49 = vld [vmem:[%s0 + $0x8] sm:$0xf]
  %v50 = vld [vmem:[%s0 + $0xc] sm:$0xf]
  %v51 = vld [vmem:[%s0 + $0x10] sm:$0xf]
  %v52 = vld [vmem:[%s0 + $0x14] sm:$0xf]
  %v53 = vld [vmem:[%s0 + $0x18] sm:$0xf]
  %v54 = vld [vmem:[%s0 + $0x1c] sm:$0xf]
  %v55 = vld [vmem:[%s0 + $0x20] sm:$0xf]
  %v56 = vld [vmem:[%s0 + $0x24] sm:$0xf]
  %v57 = vld [vmem:[%s0 + $0x28] sm:$0xf]
  %v58 = vld [vmem:[%s0 + $0x2c] sm:$0xf]
  %v59 = vld [vmem:[%s0 + $0x30] sm:$0xf]
  %v60 = vld [vmem:[%s0 + $0x34] sm:$0xf]
  %v61 = vld [vmem:[%s0 + $0x38] sm:$0xf]
  %v62 = vld [vmem:[%s0 + $0x3c] sm:$0xf]
  %v63 = vld [vmem:[%s1] sm:$0xf]
  %v64 = vld [vmem:[%s1 + $0x4] sm:$0xf]
  %v65 = vld [vmem:[%s1 + $0x8] sm:$0xf]
  %v66 = vld [vmem:[%s1 + $0xc] sm:$0xf]
  %v67 = vld [vmem:[%s1 + $0x10] sm:$0xf]
  %v68 = vld [vmem:[%s1 + $0x14] sm:$0xf]
  %v69 = vld [vmem:[%s1 + $0x18] sm:$0xf]
  %v70 = vld [vmem:[%s1 + $0x1c] sm:$0xf]
  %v71 = vld [vmem:[%s1 + $0x20] sm:$0xf]
  %v72 = vld [vmem:[%s1 + $0x24] sm:$0xf]
  %v73 = vld [vmem:[%s1 + $0x28] sm:$0xf]
  %v74 = vld [vmem:[%s1 + $0x2c] sm:$0xf]
  %v75 = vld [vmem:[%s1 + $0x30] sm:$0xf]
  %v76 = vld [vmem:[%s1 + $0x34] sm:$0xf]
  %v77 = vld [vmem:[%s1 + $0x38] sm:$0xf]
  %v78 = vld [vmem:[%s1 + $0x3c] sm:$0xf]
  %v95 = vunpack.c.l.b16 %v47
  %v96 = vunpack.c.l.b16 %v48
  %v97 = vunpack.c.l.b16 %v49
  %v98 = vunpack.c.l.b16 %v50
  %v99 = vunpack.c.l.b16 %v51
  %v100 = vunpack.c.l.b16 %v52
  %v101 = vunpack.c.l.b16 %v53
  %v102 = vunpack.c.l.b16 %v54
  %v103 = vunpack.c.l.b16 %v55
  %v104 = vunpack.c.l.b16 %v56
  %v105 = vunpack.c.l.b16 %v57
  %v106 = vunpack.c.l.b16 %v58
  %v107 = vunpack.c.l.b16 %v59
  %v108 = vunpack.c.l.b16 %v60
  %v109 = vunpack.c.l.b16 %v61
  %v110 = vunpack.c.l.b16 %v62
  %v111 = vpack.c.b16 %v96, %v95
  %v112 = vpack.c.b16 %v98, %v97
  %v113 = vpack.c.b16 %v100, %v99
  %v114 = vpack.c.b16 %v102, %v101
  %v115 = vpack.c.b16 %v104, %v103
  %v116 = vpack.c.b16 %v106, %v105
  %v117 = vpack.c.b16 %v108, %v107
  %v118 = vpack.c.b16 %v110, %v109
  %v143 = vunpack.c.l.b16 %v63
  %v144 = vunpack.c.l.b16 %v64
  %v145 = vunpack.c.l.b16 %v65
  %v146 = vunpack.c.l.b16 %v66
  %v147 = vunpack.c.l.b16 %v67
  %v148 = vunpack.c.l.b16 %v68
  %v149 = vunpack.c.l.b16 %v69
  %v150 = vunpack.c.l.b16 %v70
  %v151 = vunpack.c.l.b16 %v71
  %v152 = vunpack.c.l.b16 %v72
  %v153 = vunpack.c.l.b16 %v73
  %v154 = vunpack.c.l.b16 %v74
  %v155 = vunpack.c.l.b16 %v75
  %v156 = vunpack.c.l.b16 %v76
  %v157 = vunpack.c.l.b16 %v77
  %v158 = vunpack.c.l.b16 %v78
  %v159 = vpack.c.b16 %v144, %v143
  %v160 = vpack.c.b16 %v146, %v145
  %v161 = vpack.c.b16 %v148, %v147
  %v162 = vpack.c.b16 %v150, %v149
  %v163 = vpack.c.b16 %v152, %v151
  %v164 = vpack.c.b16 %v154, %v153
  %v165 = vpack.c.b16 %v156, %v155
  %v166 = vpack.c.b16 %v158, %v157
  %175 = vmatpush.bf16.msra.mxu0 %v166
  %176 = vmatpush.bf16.msra.mxu0 %v165
  %177 = vmatpush.bf16.msra.mxu0 %v164
  %178 = vmatpush.bf16.msra.mxu0 %v163
  %179 = vmatpush.bf16.msra.mxu0 %v162
  %180 = vmatpush.bf16.msra.mxu0 %v161
  %181 = vmatpush.bf16.msra.mxu0 %v160
  %182 = vmatpush.bf16.msra.mxu0 %v159
  %183 = vmatmul.bf16.gmra.mxu0 %v111
  %v184 = vpop.f32.mrf.mxu0
  %v185 = vadd.f32 0.0, %v184
  %v186 = vpop.f32.mrf.mxu0
  %v187 = vadd.f32 0.0, %v186
  %188 = vmatmul.bf16.gmra.mxu0 %v112
  %v189 = vpop.f32.mrf.mxu0
  %v190 = vadd.f32 0.0, %v189
  %v191 = vpop.f32.mrf.mxu0
  %v192 = vadd.f32 0.0, %v191
  %193 = vmatmul.bf16.gmra.mxu0 %v113
  %v194 = vpop.f32.mrf.mxu0
  %v195 = vadd.f32 0.0, %v194
  %v196 = vpop.f32.mrf.mxu0
  %v197 = vadd.f32 0.0, %v196
  %198 = vmatmul.bf16.gmra.mxu0 %v114
  %v199 = vpop.f32.mrf.mxu0
  %v200 = vadd.f32 0.0, %v199
  %v201 = vpop.f32.mrf.mxu0
  %v202 = vadd.f32 0.0, %v201
  %203 = vmatmul.bf16.gmra.mxu0 %v115
  %v204 = vpop.f32.mrf.mxu0
  %v205 = vadd.f32 0.0, %v204
  %v206 = vpop.f32.mrf.mxu0
  %v207 = vadd.f32 0.0, %v206
  %208 = vmatmul.bf16.gmra.mxu0 %v116
  %v209 = vpop.f32.mrf.mxu0
  %v210 = vadd.f32 0.0, %v209
  %v211 = vpop.f32.mrf.mxu0
  %v212 = vadd.f32 0.0, %v211
  %213 = vmatmul.bf16.gmra.mxu0 %v117
  %v214 = vpop.f32.mrf.mxu0
  %v215 = vadd.f32 0.0, %v214
  %v216 = vpop.f32.mrf.mxu0
  %v217 = vadd.f32 0.0, %v216
  %218 = vmatmul.bf16.gmra.mxu0 %v118
  %v219 = vpop.f32.mrf.mxu0
  %v220 = vadd.f32 0.0, %v219
  %v221 = vpop.f32.mrf.mxu0
  %v222 = vadd.f32 0.0, %v221
  %223 = vdwg.mxu0
  %v224 = vadd.f32 %v31, %v185
  %v225 = vadd.f32 %v32, %v187
  %v226 = vadd.f32 %v33, %v190
  %v227 = vadd.f32 %v34, %v192
  %v228 = vadd.f32 %v35, %v195
  %v229 = vadd.f32 %v36, %v197
  %v230 = vadd.f32 %v37, %v200
  %v231 = vadd.f32 %v38, %v202
  %v232 = vadd.f32 %v39, %v205
  %v233 = vadd.f32 %v40, %v207
  %v234 = vadd.f32 %v41, %v210
  %v235 = vadd.f32 %v42, %v212
  %v236 = vadd.f32 %v43, %v215
  %v237 = vadd.f32 %v44, %v217
  %v238 = vadd.f32 %v45, %v220
  %v239 = vadd.f32 %v46, %v222
  %240 = vst [vmem:[#allocation2] sm:$0xff] %v224
  %241 = vst [vmem:[#allocation2 + $0x8] sm:$0xff] %v225
  %242 = vst [vmem:[#allocation2 + $0x10] sm:$0xff] %v226
  %243 = vst [vmem:[#allocation2 + $0x18] sm:$0xff] %v227
  %244 = vst [vmem:[#allocation2 + $0x20] sm:$0xff] %v228
  %245 = vst [vmem:[#allocation2 + $0x28] sm:$0xff] %v229
  %246 = vst [vmem:[#allocation2 + $0x30] sm:$0xff] %v230
  %247 = vst [vmem:[#allocation2 + $0x38] sm:$0xff] %v231
  %248 = vst [vmem:[#allocation2 + $0x40] sm:$0xff] %v232
  %249 = vst [vmem:[#allocation2 + $0x48] sm:$0xff] %v233
  %250 = vst [vmem:[#allocation2 + $0x50] sm:$0xff] %v234
  %251 = vst [vmem:[#allocation2 + $0x58] sm:$0xff] %v235
  %252 = vst [vmem:[#allocation2 + $0x60] sm:$0xff] %v236
  %253 = vst [vmem:[#allocation2 + $0x68] sm:$0xff] %v237
  %254 = vst [vmem:[#allocation2 + $0x70] sm:$0xff] %v238
  %255 = vst [vmem:[#allocation2 + $0x78] sm:$0xff] %v239
  // Predicated region
  $region14: #{inception_forward.2} parent=0 // pred_check
    %p256 = pneg %p11
  $region15: #{inception_forward.2} parent=0 // pred_check_branch
    %258 = sbr.rel (%p256) target = $region17
  $region16: #{inception_forward.2} parent=0 // pred_region
    %v259 = vld [vmem:[#allocation2] sm:$0xff]
    %v260 = vld [vmem:[#allocation2 + $0x8] sm:$0xff]
    %v261 = vld [vmem:[#allocation2 + $0x10] sm:$0xff]
    %v262 = vld [vmem:[#allocation2 + $0x18] sm:$0xff]
    %v263 = vld [vmem:[#allocation2 + $0x20] sm:$0xff]
    %v264 = vld [vmem:[#allocation2 + $0x28] sm:$0xff]
    %v265 = vld [vmem:[#allocation2 + $0x30] sm:$0xff]
    %v266 = vld [vmem:[#allocation2 + $0x38] sm:$0xff]
    %v267 = vld [vmem:[#allocation2 + $0x40] sm:$0xff]
    %v268 = vld [vmem:[#allocation2 + $0x48] sm:$0xff]
    %v269 = vld [vmem:[#allocation2 + $0x50] sm:$0xff]
    %v270 = vld [vmem:[#allocation2 + $0x58] sm:$0xff]
    %v271 = vld [vmem:[#allocation2 + $0x60] sm:$0xff]
    %v272 = vld [vmem:[#allocation2 + $0x68] sm:$0xff]
    %v273 = vld [vmem:[#allocation2 + $0x70] sm:$0xff]
    %v274 = vld [vmem:[#allocation2 + $0x78] sm:$0xff]
    %275 = vst [vmem:[%s2] sm:$0xff] %v259
    %276 = vst [vmem:[%s2 + $0x8] sm:$0xff] %v260
    %277 = vst [vmem:[%s2 + $0x10] sm:$0xff] %v261
    %278 = vst [vmem:[%s2 + $0x18] sm:$0xff] %v262
    %279 = vst [vmem:[%s2 + $0x20] sm:$0xff] %v263
    %280 = vst [vmem:[%s2 + $0x28] sm:$0xff] %v264
    %281 = vst [vmem:[%s2 + $0x30] sm:$0xff] %v265
    %282 = vst [vmem:[%s2 + $0x38] sm:$0xff] %v266
    %283 = vst [vmem:[%s2 + $0x40] sm:$0xff] %v267
    %284 = vst [vmem:[%s2 + $0x48] sm:$0xff] %v268
    %285 = vst [vmem:[%s2 + $0x50] sm:$0xff] %v269
    %286 = vst [vmem:[%s2 + $0x58] sm:$0xff] %v270
    %287 = vst [vmem:[%s2 + $0x60] sm:$0xff] %v271
    %288 = vst [vmem:[%s2 + $0x68] sm:$0xff] %v272
    %289 = vst [vmem:[%s2 + $0x70] sm:$0xff] %v273
    %290 = vst [vmem:[%s2 + $0x78] sm:$0xff] %v274
  $region17: #{inception_forward.2} parent=0 // pred_fallthru
    _
  // Predicated region
  $region18: #{inception_forward.2} parent=0 // pred_check
    _
  $region19: #{inception_forward.2} parent=0 // pred_check_branch
    %292 = sbr.rel (0) target = $region21
  $region20: #{inception_forward.2} parent=0 // pred_region
    _
  $region21: #{inception_forward.2} parent=0 // pred_fallthru
    _
  // Predicated region
  $region22: #{inception_forward.2} parent=0 // pred_check
    _
  $region23: #{inception_forward.2} parent=0 // pred_check_branch
    %294 = sbr.rel (0) target = $region25
  $region24: #{inception_forward.2} parent=0 // pred_region
    _
  $region25: #{inception_forward.2} parent=0 // pred_fallthru
    _

// kernel: inception_forward.3
$region0: #{inception_forward.3}
  #allocation0 [shape = 'u32[]', space=smem, size = 0x4, offset = 0x4, fixed_abs, tag = 'smem constant byte address 0x4 - core index']
  #allocation1 [shape = 'u32[72,128]{1,0:T(1,128)}', space=vmem, size = 0x9000, scoped, tag = 'internal scratch']
  #allocation2 [shape = 'f32[8,256]{1,0:T(8,128)}', space=vmem, size = 0x2000, scoped, tag = 'scratch operand']
  %s0 = inlined_call_operand.vmem [shape: bf16[8,2048], index: 0, kind: input, shape index: {}]
  %s1 = inlined_call_operand.vmem [shape: bf16[2048,256], index: 1, kind: input, shape index: {}]
  %s2 = inlined_call_operand.vmem [shape: f32[1,256], index: 2, kind: input, shape index: {}]
  %s3 = inlined_call_operand.vmem [shape: f32[256,128], index: 3, kind: input, shape index: {}]
  %s4 = inlined_call_operand.vmem [shape: f32[1,128], index: 4, kind: input, shape index: {}]
  %s5 = inlined_call_operand.vmem [shape: f32[8,128], index: 5, kind: output, shape index: {}]
  %s6 = sld [smem:[#allocation0]]
  $region61: #{inception_forward.3} parent=0
    _
  %s8 = ssub.s32 1, %s6
  %s9 = scalar_select 0, %s8, %s6
  loop: start=0, step=1, limit=6
  $region2: #{inception_forward.3} parent=0 // loop_pre_header
    _
  $region3: #{inception_forward.3} parent=0 // loop_header
    %s11 = sphi 0, %s15
    %p12 = scmp.ge.s32.totalorder %s11, 6
    %s21 = sphi 0, %s23
    %s24 = sphi 0, %s21
    %s25 = sphi 0, %s24
    %s41 = sphi 0, %s25
    %s47 = sphi 0, %s49
    %s50 = sphi 0, %s47
    %s51 = sphi 0, %s50
    %s67 = sphi 0, %s51
    %s71 = sphi 0, %s71
    %s73 = sphi 0, %s71
    %s74 = sphi 0, %s73
    %s88 = sphi 0, %s74
    %s92 = sphi 0, %s92
    %s94 = sphi 0, %s92
    %s95 = sphi 0, %s94
    %s109 = sphi 0, %s95
    %s113 = sphi 0, %s113
    %s115 = sphi 0, %s113
    %s116 = sphi 0, %s115
    %s130 = sphi 0, %s116
    %s134 = sphi 0, %s134
    %s136 = sphi 0, %s134
    %s137 = sphi 0, %s136
    %s151 = sphi 0, %s137
  $region4: #{inception_forward.3} parent=0 // loop_header_branch
    %14 = sbr.rel (%p12) target = $region8
  $region5: #{inception_forward.3} parent=0 // loop_body
    %s16 = ssub.s32 %s11, 1
    %s17 = ssub.s32 %s11, 2
    %s18 = sadd.s32 %s11, 1
    %s19 = ssub.s32 %s11, %s18
    %p20 = scmp.eq.s32.totalorder %s19, 0
    %s22 = sadd.s32 %s21, 1
    %s23 = scalar_select %p20, %s21, %s22
    %p26 = pneg %p20
    %p27 = scmp.eq.s32.totalorder %s11, 3
    %p28 = por %p26, %p27
    %p29 = scmp.ne.s32.totalorder %s21, %s24
    %p30 = scmp.eq.s32.totalorder %s11, 0
    %p31 = por %p29, %p30
    %p32 = scmp.ne.s32.totalorder %s21, %s24
    %p33 = scmp.eq.s32.totalorder %s16, 3
    %p34 = por %p32, %p33
    %p35 = scmp.ne.s32.totalorder %s24, %s25
    %p36 = scmp.eq.s32.totalorder %s16, 0
    %p37 = por %p35, %p36
    %p38 = scmp.ne.s32.totalorder %s24, %s25
    %p39 = scmp.eq.s32.totalorder %s17, 3
    %p40 = por %p38, %p39
    %p42 = scmp.ne.s32.totalorder %s25, %s41
    %p43 = scmp.eq.s32.totalorder %s17, 0
    %p44 = por %p42, %p43
    %s45 = ssub.s32 %s11, %s18
    %p46 = scmp.eq.s32.totalorder %s45, 0
    %s48 = sadd.s32 %s47, 1
    %s49 = scalar_select %p46, %s47, %s48
    %p52 = pneg %p46
    %p53 = scmp.eq.s32.totalorder %s11, 3
    %p54 = por %p52, %p53
    %p55 = scmp.ne.s32.totalorder %s47, %s50
    %p56 = scmp.eq.s32.totalorder %s11, 0
    %p57 = por %p55, %p56
    %p58 = scmp.ne.s32.totalorder %s47, %s50
    %p59 = scmp.eq.s32.totalorder %s16, 3
    %p60 = por %p58, %p59
    %p61 = scmp.ne.s32.totalorder %s50, %s51
    %p62 = scmp.eq.s32.totalorder %s16, 0
    %p63 = por %p61, %p62
    %p64 = scmp.ne.s32.totalorder %s50, %s51
    %p65 = scmp.eq.s32.totalorder %s17, 3
    %p66 = por %p64, %p65
    %p68 = scmp.ne.s32.totalorder %s51, %s67
    %p69 = scmp.eq.s32.totalorder %s17, 0
    %p70 = por %p68, %p69
    %s72 = sadd.s32 %s71, 1
    %p75 = scmp.eq.s32.totalorder %s11, 3
    %p76 = scmp.ne.s32.totalorder %s71, %s73
    %p77 = scmp.eq.s32.totalorder %s11, 0
    %p78 = por %p76, %p77
    %p79 = scmp.ne.s32.totalorder %s71, %s73
    %p80 = scmp.eq.s32.totalorder %s16, 3
    %p81 = por %p79, %p80
    %p82 = scmp.ne.s32.totalorder %s73, %s74
    %p83 = scmp.eq.s32.totalorder %s16, 0
    %p84 = por %p82, %p83
    %p85 = scmp.ne.s32.totalorder %s73, %s74
    %p86 = scmp.eq.s32.totalorder %s17, 3
    %p87 = por %p85, %p86
    %p89 = scmp.ne.s32.totalorder %s74, %s88
    %p90 = scmp.eq.s32.totalorder %s17, 0
    %p91 = por %p89, %p90
    %s93 = sadd.s32 %s92, 1
    %p96 = scmp.eq.s32.totalorder %s11, 3
    %p97 = scmp.ne.s32.totalorder %s92, %s94
    %p98 = scmp.eq.s32.totalorder %s11, 0
    %p99 = por %p97, %p98
    %p100 = scmp.ne.s32.totalorder %s92, %s94
    %p101 = scmp.eq.s32.totalorder %s16, 3
    %p102 = por %p100, %p101
    %p103 = scmp.ne.s32.totalorder %s94, %s95
    %p104 = scmp.eq.s32.totalorder %s16, 0
    %p105 = por %p103, %p104
    %p106 = scmp.ne.s32.totalorder %s94, %s95
    %p107 = scmp.eq.s32.totalorder %s17, 3
    %p108 = por %p106, %p107
    %p110 = scmp.ne.s32.totalorder %s95, %s109
    %p111 = scmp.eq.s32.totalorder %s17, 0
    %p112 = por %p110, %p111
    %s114 = sadd.s32 %s113, 1
    %p117 = scmp.eq.s32.totalorder %s11, 3
    %p118 = scmp.ne.s32.totalorder %s113, %s115
    %p119 = scmp.eq.s32.totalorder %s11, 0
    %p120 = por %p118, %p119
    %p121 = scmp.ne.s32.totalorder %s113, %s115
    %p122 = scmp.eq.s32.totalorder %s16, 3
    %p123 = por %p121, %p122
    %p124 = scmp.ne.s32.totalorder %s115, %s116
    %p125 = scmp.eq.s32.totalorder %s16, 0
    %p126 = por %p124, %p125
    %p127 = scmp.ne.s32.totalorder %s115, %s116
    %p128 = scmp.eq.s32.totalorder %s17, 3
    %p129 = por %p127, %p128
    %p131 = scmp.ne.s32.totalorder %s116, %s130
    %p132 = scmp.eq.s32.totalorder %s17, 0
    %p133 = por %p131, %p132
    %s135 = sadd.s32 %s134, 1
    %p138 = scmp.eq.s32.totalorder %s11, 3
    %p139 = scmp.ne.s32.totalorder %s134, %s136
    %p140 = scmp.eq.s32.totalorder %s11, 0
    %p141 = por %p139, %p140
    %p142 = scmp.ne.s32.totalorder %s134, %s136
    %p143 = scmp.eq.s32.totalorder %s16, 3
    %p144 = por %p142, %p143
    %p145 = scmp.ne.s32.totalorder %s136, %s137
    %p146 = scmp.eq.s32.totalorder %s16, 0
    %p147 = por %p145, %p146
    %p148 = scmp.ne.s32.totalorder %s136, %s137
    %p149 = scmp.eq.s32.totalorder %s17, 3
    %p150 = por %p148, %p149
    %p152 = scmp.ne.s32.totalorder %s137, %s151
    %p153 = scmp.eq.s32.totalorder %s17, 0
    %p154 = por %p152, %p153
    %p155 = scmp.le.s32.totalorder 1, %s11
    %p156 = scmp.lt.s32.totalorder %s11, 5
    %p157 = pnand %p155, %p156
    %p158 = pneg %p157
    // Predicated region
    $region9: #{inception_forward.3} parent=5 // pred_check
      _
    $region10: #{inception_forward.3} parent=5 // pred_check_branch
      %160 = sbr.rel (%p157) target = $region12
    $region11: #{inception_forward.3} parent=5 // pred_region
      %s161 = ssub.s32 %s11, 1
      // Predicated region
      $region13: #{inception_forward.3} parent=11 // pred_check
        %p162 = pneg %p84
      $region14: #{inception_forward.3} parent=11 // pred_check_branch
        %164 = sbr.rel (%p162) target = $region16
      $region15: #{inception_forward.3} parent=11 // pred_region
        _
      $region16: #{inception_forward.3} parent=11 // pred_fallthru
        _
      // Predicated region
      $region17: #{inception_forward.3} parent=11 // pred_check
        %p165 = pneg %p105
      $region18: #{inception_forward.3} parent=11 // pred_check_branch
        %167 = sbr.rel (%p165) target = $region20
      $region19: #{inception_forward.3} parent=11 // pred_region
        _
      $region20: #{inception_forward.3} parent=11 // pred_fallthru
        _
      // Predicated region
      $region21: #{inception_forward.3} parent=11 // pred_check
        %p168 = pneg %p126
      $region22: #{inception_forward.3} parent=11 // pred_check_branch
        %170 = sbr.rel (%p168) target = $region24
      $region23: #{inception_forward.3} parent=11 // pred_region
        _
      $region24: #{inception_forward.3} parent=11 // pred_fallthru
        _
    $region12: #{inception_forward.3} parent=5 // pred_fallthru
      _
    %p171 = scmp.lt.s32.totalorder %s11, 4
    // Predicated region
    $region25: #{inception_forward.3} parent=5 // pred_check
      %p172 = pneg %p171
    $region26: #{inception_forward.3} parent=5 // pred_check_branch
      %174 = sbr.rel (%p172) target = $region28
    $region27: #{inception_forward.3} parent=5 // pred_region
      // Predicated region
      $region29: #{inception_forward.3} parent=27 // pred_check
        %p175 = pneg %p31
      $region30: #{inception_forward.3} parent=27 // pred_check_branch
        %177 = sbr.rel (%p175) target = $region32
      $region31: #{inception_forward.3} parent=27 // pred_region
        %s178 = smul.u32 4, %s11
        %p179 = scmp.lt.s32.totalorder %s178, 15
        %s180 = scalar_select %p179, %s178, 15
        %s181 = smul.addr %s180, 4
        %s182 = scalar_lea.vmem %s0, %s181
        %s183 = smul.u32 4, %s11
      $region32: #{inception_forward.3} parent=27 // pred_fallthru
        _
      // Predicated region
      $region33: #{inception_forward.3} parent=27 // pred_check
        %p184 = pneg %p57
      $region34: #{inception_forward.3} parent=27 // pred_check_branch
        %186 = sbr.rel (%p184) target = $region36
      $region35: #{inception_forward.3} parent=27 // pred_region
        %s187 = smul.u32 64, %s11
        %p188 = scmp.lt.s32.totalorder %s187, 255
        %s189 = scalar_select %p188, %s187, 255
        %s190 = smul.addr %s189, 2
        %s191 = smul.addr %s190, 4
        %s192 = scalar_lea.vmem %s1, %s191
        %s193 = smul.u32 64, %s11
      $region36: #{inception_forward.3} parent=27 // pred_fallthru
        _
    $region28: #{inception_forward.3} parent=5 // pred_fallthru
      _
    %p194 = scmp.le.s32.totalorder 1, %s11
    %p195 = scmp.lt.s32.totalorder %s11, 5
    %p196 = pnand %p194, %p195
    %p197 = pneg %p196
    // Predicated region
    $region37: #{inception_forward.3} parent=5 // pred_check
      _
    $region38: #{inception_forward.3} parent=5 // pred_check_branch
      %199 = sbr.rel (%p196) target = $region40
    $region39: #{inception_forward.3} parent=5 // pred_region
      %s200 = ssub.s32 %s11, 1
      %s201 = smul.u32 4, %s16
      %p202 = scmp.lt.s32.totalorder %s201, 15
      %s203 = scalar_select %p202, %s201, 15
      %s204 = smul.addr %s203, 4
      %s205 = scalar_lea.vmem %s0, %s204
      %p206 = pneg %p37
      %p207 = pneg %p34
      %s208 = smul.u32 64, %s16
      %p209 = scmp.lt.s32.totalorder %s208, 255
      %s210 = scalar_select %p209, %s208, 255
      %s211 = smul.addr %s210, 2
      %s212 = smul.addr %s211, 4
      %s213 = scalar_lea.vmem %s1, %s212
      %p214 = pneg %p63
      %p215 = pneg %p60
      %p216 = pneg %p84
      %p217 = pneg %p81
      %p218 = pneg %p105
      %p219 = pneg %p102
      %p220 = pneg %p126
      %p221 = pneg %p123
      %p222 = pneg %p147
      %p223 = pneg %p144
      %s224 = smul.u32 4, %s16
      %p225 = scmp.lt.s32.totalorder %s224, 15
      %s226 = scalar_select %p225, %s224, 15
      %s227 = smul.addr %s226, 4
      %s228 = scalar_lea.vmem %s0, %s227
      %s229 = smul.u32 4, %s16
      %s230 = smul.u32 64, %s16
      %p231 = scmp.lt.s32.totalorder %s230, 255
      %s232 = scalar_select %p231, %s230, 255
      %s233 = smul.addr %s232, 2
      %s234 = smul.addr %s233, 4
      %s235 = scalar_lea.vmem %s1, %s234
      %s236 = smul.u32 64, %s16
      %p237 = scmp.eq.s32.totalorder %s16, 0
      // Predicated region
      $region41: #{inception_forward.3} parent=39 // pred_check
        %p238 = pneg %p237
      $region42: #{inception_forward.3} parent=39 // pred_check_branch
        %240 = sbr.rel (%p238) target = $region44
      $region43: #{inception_forward.3} parent=39 // pred_region
        %241 = vst [vmem:[#allocation2] sm:$0xff] 0.0
        %242 = vst [vmem:[#allocation2 + $0x8] sm:$0xff] 0.0
      $region44: #{inception_forward.3} parent=39 // pred_fallthru
        _
      %v243 = vld [vmem:[#allocation2] sm:$0xff]
      %v244 = vld [vmem:[#allocation2 + $0x8] sm:$0xff]
      %v245 = vld [vmem:[%s228] sm:$0xff]
      %v246 = vld [vmem:[%s228 + $0x8] sm:$0xff]
      %v247 = vld [vmem:[%s235] sm:$0xff]
      %v248 = vld [vmem:[%s235 + $0x8] sm:$0xff]
      %v249 = vld [vmem:[%s235 + $0x10] sm:$0xff]
      %v250 = vld [vmem:[%s235 + $0x18] sm:$0xff]
      %v251 = vld [vmem:[%s235 + $0x20] sm:$0xff]
      %v252 = vld [vmem:[%s235 + $0x28] sm:$0xff]
      %v253 = vld [vmem:[%s235 + $0x30] sm:$0xff]
      %v254 = vld [vmem:[%s235 + $0x38] sm:$0xff]
      %v255 = vld [vmem:[%s235 + $0x40] sm:$0xff]
      %v256 = vld [vmem:[%s235 + $0x48] sm:$0xff]
      %v257 = vld [vmem:[%s235 + $0x50] sm:$0xff]
      %v258 = vld [vmem:[%s235 + $0x58] sm:$0xff]
      %v259 = vld [vmem:[%s235 + $0x60] sm:$0xff]
      %v260 = vld [vmem:[%s235 + $0x68] sm:$0xff]
      %v261 = vld [vmem:[%s235 + $0x70] sm:$0xff]
      %v262 = vld [vmem:[%s235 + $0x78] sm:$0xff]
      %v263 = vld [vmem:[%s235 + $0x80] sm:$0xff]
      %v264 = vld [vmem:[%s235 + $0x88] sm:$0xff]
      %v265 = vld [vmem:[%s235 + $0x90] sm:$0xff]
      %v266 = vld [vmem:[%s235 + $0x98] sm:$0xff]
      %v267 = vld [vmem:[%s235 + $0xa0] sm:$0xff]
      %v268 = vld [vmem:[%s235 + $0xa8] sm:$0xff]
      %v269 = vld [vmem:[%s235 + $0xb0] sm:$0xff]
      %v270 = vld [vmem:[%s235 + $0xb8] sm:$0xff]
      %v271 = vld [vmem:[%s235 + $0xc0] sm:$0xff]
      %v272 = vld [vmem:[%s235 + $0xc8] sm:$0xff]
      %v273 = vld [vmem:[%s235 + $0xd0] sm:$0xff]
      %v274 = vld [vmem:[%s235 + $0xd8] sm:$0xff]
      %v275 = vld [vmem:[%s235 + $0xe0] sm:$0xff]
      %v276 = vld [vmem:[%s235 + $0xe8] sm:$0xff]
      %v277 = vld [vmem:[%s235 + $0xf0] sm:$0xff]
      %v278 = vld [vmem:[%s235 + $0xf8] sm:$0xff]
      %v279 = vld [vmem:[%s235 + $0x100] sm:$0xff]
      %v280 = vld [vmem:[%s235 + $0x108] sm:$0xff]
      %v281 = vld [vmem:[%s235 + $0x110] sm:$0xff]
      %v282 = vld [vmem:[%s235 + $0x118] sm:$0xff]
      %v283 = vld [vmem:[%s235 + $0x120] sm:$0xff]
      %v284 = vld [vmem:[%s235 + $0x128] sm:$0xff]
      %v285 = vld [vmem:[%s235 + $0x130] sm:$0xff]
      %v286 = vld [vmem:[%s235 + $0x138] sm:$0xff]
      %v287 = vld [vmem:[%s235 + $0x140] sm:$0xff]
      %v288 = vld [vmem:[%s235 + $0x148] sm:$0xff]
      %v289 = vld [vmem:[%s235 + $0x150] sm:$0xff]
      %v290 = vld [vmem:[%s235 + $0x158] sm:$0xff]
      %v291 = vld [vmem:[%s235 + $0x160] sm:$0xff]
      %v292 = vld [vmem:[%s235 + $0x168] sm:$0xff]
      %v293 = vld [vmem:[%s235 + $0x170] sm:$0xff]
      %v294 = vld [vmem:[%s235 + $0x178] sm:$0xff]
      %v295 = vld [vmem:[%s235 + $0x180] sm:$0xff]
      %v296 = vld [vmem:[%s235 + $0x188] sm:$0xff]
      %v297 = vld [vmem:[%s235 + $0x190] sm:$0xff]
      %v298 = vld [vmem:[%s235 + $0x198] sm:$0xff]
      %v299 = vld [vmem:[%s235 + $0x1a0] sm:$0xff]
      %v300 = vld [vmem:[%s235 + $0x1a8] sm:$0xff]
      %v301 = vld [vmem:[%s235 + $0x1b0] sm:$0xff]
      %v302 = vld [vmem:[%s235 + $0x1b8] sm:$0xff]
      %v303 = vld [vmem:[%s235 + $0x1c0] sm:$0xff]
      %v304 = vld [vmem:[%s235 + $0x1c8] sm:$0xff]
      %v305 = vld [vmem:[%s235 + $0x1d0] sm:$0xff]
      %v306 = vld [vmem:[%s235 + $0x1d8] sm:$0xff]
      %v307 = vld [vmem:[%s235 + $0x1e0] sm:$0xff]
      %v308 = vld [vmem:[%s235 + $0x1e8] sm:$0xff]
      %v309 = vld [vmem:[%s235 + $0x1f0] sm:$0xff]
      %v310 = vld [vmem:[%s235 + $0x1f8] sm:$0xff]
      %v313 = vunpack.c.l.b16 %v245
      %v314 = vunpack.c.h.b16 %v245
      %v315 = vunpack.c.l.b16 %v246
      %v316 = vunpack.c.h.b16 %v246
      %v317 = vpack.c.b16 %v313, %v313
      %v318 = vpack.c.b16 %v314, %v314
      %v319 = vpack.c.b16 %v315, %v315
      %v320 = vpack.c.b16 %v316, %v316
      %v389 = vunpack.c.l.b16 %v247
      %v390 = vunpack.c.h.b16 %v247
      %v391 = vunpack.c.l.b16 %v248
      %v392 = vunpack.c.h.b16 %v248
      %v393 = vunpack.c.l.b16 %v249
      %v394 = vunpack.c.h.b16 %v249
      %v395 = vunpack.c.l.b16 %v250
      %v396 = vunpack.c.h.b16 %v250
      %v397 = vunpack.c.l.b16 %v251
      %v398 = vunpack.c.h.b16 %v251
      %v399 = vunpack.c.l.b16 %v252
      %v400 = vunpack.c.h.b16 %v252
      %v401 = vunpack.c.l.b16 %v253
      %v402 = vunpack.c.h.b16 %v253
      %v403 = vunpack.c.l.b16 %v254
      %v404 = vunpack.c.h.b16 %v254
      %v405 = vunpack.c.l.b16 %v255
      %v406 = vunpack.c.h.b16 %v255
      %v407 = vunpack.c.l.b16 %v256
      %v408 = vunpack.c.h.b16 %v256
      %v409 = vunpack.c.l.b16 %v257
      %v410 = vunpack.c.h.b16 %v257
      %v411 = vunpack.c.l.b16 %v258
      %v412 = vunpack.c.h.b16 %v258
      %v413 = vunpack.c.l.b16 %v259
      %v414 = vunpack.c.h.b16 %v259
      %v415 = vunpack.c.l.b16 %v260
      %v416 = vunpack.c.h.b16 %v260
      %v417 = vunpack.c.l.b16 %v261
      %v418 = vunpack.c.h.b16 %v261
      %v419 = vunpack.c.l.b16 %v262
      %v420 = vunpack.c.h.b16 %v262
      %v421 = vunpack.c.l.b16 %v263
      %v422 = vunpack.c.h.b16 %v263
      %v423 = vunpack.c.l.b16 %v264
      %v424 = vunpack.c.h.b16 %v264
      %v425 = vunpack.c.l.b16 %v265
      %v426 = vunpack.c.h.b16 %v265
      %v427 = vunpack.c.l.b16 %v266
      %v428 = vunpack.c.h.b16 %v266
      %v429 = vunpack.c.l.b16 %v267
      %v430 = vunpack.c.h.b16 %v267
      %v431 = vunpack.c.l.b16 %v268
      %v432 = vunpack.c.h.b16 %v268
      %v433 = vunpack.c.l.b16 %v269
      %v434 = vunpack.c.h.b16 %v269
      %v435 = vunpack.c.l.b16 %v270
      %v436 = vunpack.c.h.b16 %v270
      %v437 = vunpack.c.l.b16 %v271
      %v438 = vunpack.c.h.b16 %v271
      %v439 = vunpack.c.l.b16 %v272
      %v440 = vunpack.c.h.b16 %v272
      %v441 = vunpack.c.l.b16 %v273
      %v442 = vunpack.c.h.b16 %v273
      %v443 = vunpack.c.l.b16 %v274
      %v444 = vunpack.c.h.b16 %v274
      %v445 = vunpack.c.l.b16 %v275
      %v446 = vunpack.c.h.b16 %v275
      %v447 = vunpack.c.l.b16 %v276
      %v448 = vunpack.c.h.b16 %v276
      %v449 = vunpack.c.l.b16 %v277
      %v450 = vunpack.c.h.b16 %v277
      %v451 = vunpack.c.l.b16 %v278
      %v452 = vunpack.c.h.b16 %v278
      %v453 = vunpack.c.l.b16 %v279
      %v454 = vunpack.c.h.b16 %v279
      %v455 = vunpack.c.l.b16 %v280
      %v456 = vunpack.c.h.b16 %v280
      %v457 = vunpack.c.l.b16 %v281
      %v458 = vunpack.c.h.b16 %v281
      %v459 = vunpack.c.l.b16 %v282
      %v460 = vunpack.c.h.b16 %v282
      %v461 = vunpack.c.l.b16 %v283
      %v462 = vunpack.c.h.b16 %v283
      %v463 = vunpack.c.l.b16 %v284
      %v464 = vunpack.c.h.b16 %v284
      %v465 = vunpack.c.l.b16 %v285
      %v466 = vunpack.c.h.b16 %v285
      %v467 = vunpack.c.l.b16 %v286
      %v468 = vunpack.c.h.b16 %v286
      %v469 = vunpack.c.l.b16 %v287
      %v470 = vunpack.c.h.b16 %v287
      %v471 = vunpack.c.l.b16 %v288
      %v472 = vunpack.c.h.b16 %v288
      %v473 = vunpack.c.l.b16 %v289
      %v474 = vunpack.c.h.b16 %v289
      %v475 = vunpack.c.l.b16 %v290
      %v476 = vunpack.c.h.b16 %v290
      %v477 = vunpack.c.l.b16 %v291
      %v478 = vunpack.c.h.b16 %v291
      %v479 = vunpack.c.l.b16 %v292
      %v480 = vunpack.c.h.b16 %v292
      %v481 = vunpack.c.l.b16 %v293
      %v482 = vunpack.c.h.b16 %v293
      %v483 = vunpack.c.l.b16 %v294
      %v484 = vunpack.c.h.b16 %v294
      %v485 = vunpack.c.l.b16 %v295
      %v486 = vunpack.c.h.b16 %v295
      %v487 = vunpack.c.l.b16 %v296
      %v488 = vunpack.c.h.b16 %v296
      %v489 = vunpack.c.l.b16 %v297
      %v490 = vunpack.c.h.b16 %v297
      %v491 = vunpack.c.l.b16 %v298
      %v492 = vunpack.c.h.b16 %v298
      %v493 = vunpack.c.l.b16 %v299
      %v494 = vunpack.c.h.b16 %v299
      %v495 = vunpack.c.l.b16 %v300
      %v496 = vunpack.c.h.b16 %v300
      %v497 = vunpack.c.l.b16 %v301
      %v498 = vunpack.c.h.b16 %v301
      %v499 = vunpack.c.l.b16 %v302
      %v500 = vunpack.c.h.b16 %v302
      %v501 = vunpack.c.l.b16 %v303
      %v502 = vunpack.c.h.b16 %v303
      %v503 = vunpack.c.l.b16 %v304
      %v504 = vunpack.c.h.b16 %v304
      %v505 = vunpack.c.l.b16 %v305
      %v506 = vunpack.c.h.b16 %v305
      %v507 = vunpack.c.l.b16 %v306
      %v508 = vunpack.c.h.b16 %v306
      %v509 = vunpack.c.l.b16 %v307
      %v510 = vunpack.c.h.b16 %v307
      %v511 = vunpack.c.l.b16 %v308
      %v512 = vunpack.c.h.b16 %v308
      %v513 = vunpack.c.l.b16 %v309
      %v514 = vunpack.c.h.b16 %v309
      %v515 = vunpack.c.l.b16 %v310
      %v516 = vunpack.c.h.b16 %v310
      %v517 = vpack.c.b16 %v391, %v389
      %v518 = vpack.c.b16 %v392, %v390
      %v519 = vpack.c.b16 %v395, %v393
      %v520 = vpack.c.b16 %v396, %v394
      %v521 = vpack.c.b16 %v399, %v397
      %v522 = vpack.c.b16 %v400, %v398
      %v523 = vpack.c.b16 %v403, %v401
      %v524 = vpack.c.b16 %v404, %v402
      %v525 = vpack.c.b16 %v407, %v405
      %v526 = vpack.c.b16 %v408, %v406
      %v527 = vpack.c.b16 %v411, %v409
      %v528 = vpack.c.b16 %v412, %v410
      %v529 = vpack.c.b16 %v415, %v413
      %v530 = vpack.c.b16 %v416, %v414
      %v531 = vpack.c.b16 %v419, %v417
      %v532 = vpack.c.b16 %v420, %v418
      %v533 = vpack.c.b16 %v423, %v421
      %v534 = vpack.c.b16 %v424, %v422
      %v535 = vpack.c.b16 %v427, %v425
      %v536 = vpack.c.b16 %v428, %v426
      %v537 = vpack.c.b16 %v431, %v429
      %v538 = vpack.c.b16 %v432, %v430
      %v539 = vpack.c.b16 %v435, %v433
      %v540 = vpack.c.b16 %v436, %v434
      %v541 = vpack.c.b16 %v439, %v437
      %v542 = vpack.c.b16 %v440, %v438
      %v543 = vpack.c.b16 %v443, %v441
      %v544 = vpack.c.b16 %v444, %v442
      %v545 = vpack.c.b16 %v447, %v445
      %v546 = vpack.c.b16 %v448, %v446
      %v547 = vpack.c.b16 %v451, %v449
      %v548 = vpack.c.b16 %v452, %v450
      %v549 = vpack.c.b16 %v455, %v453
      %v550 = vpack.c.b16 %v456, %v454
      %v551 = vpack.c.b16 %v459, %v457
      %v552 = vpack.c.b16 %v460, %v458
      %v553 = vpack.c.b16 %v463, %v461
      %v554 = vpack.c.b16 %v464, %v462
      %v555 = vpack.c.b16 %v467, %v465
      %v556 = vpack.c.b16 %v468, %v466
      %v557 = vpack.c.b16 %v471, %v469
      %v558 = vpack.c.b16 %v472, %v470
      %v559 = vpack.c.b16 %v475, %v473
      %v560 = vpack.c.b16 %v476, %v474
      %v561 = vpack.c.b16 %v479, %v477
      %v562 = vpack.c.b16 %v480, %v478
      %v563 = vpack.c.b16 %v483, %v481
      %v564 = vpack.c.b16 %v484, %v482
      %v565 = vpack.c.b16 %v487, %v485
      %v566 = vpack.c.b16 %v488, %v486
      %v567 = vpack.c.b16 %v491, %v489
      %v568 = vpack.c.b16 %v492, %v490
      %v569 = vpack.c.b16 %v495, %v493
      %v570 = vpack.c.b16 %v496, %v494
      %v571 = vpack.c.b16 %v499, %v497
      %v572 = vpack.c.b16 %v500, %v498
      %v573 = vpack.c.b16 %v503, %v501
      %v574 = vpack.c.b16 %v504, %v502
      %v575 = vpack.c.b16 %v507, %v505
      %v576 = vpack.c.b16 %v508, %v506
      %v577 = vpack.c.b16 %v511, %v509
      %v578 = vpack.c.b16 %v512, %v510
      %v579 = vpack.c.b16 %v515, %v513
      %v580 = vpack.c.b16 %v516, %v514
      %645 = vmatpush.bf16.msra.mxu0 %v531
      %646 = vmatpush.bf16.msra.mxu0 %v529
      %647 = vmatpush.bf16.msra.mxu0 %v527
      %648 = vmatpush.bf16.msra.mxu0 %v525
      %649 = vmatpush.bf16.msra.mxu0 %v523
      %650 = vmatpush.bf16.msra.mxu0 %v521
      %651 = vmatpush.bf16.msra.mxu0 %v519
      %652 = vmatpush.bf16.msra.mxu0 %v517
      %653 = vmatmul.bf16.gmra.mxu0 %v317
      %v654 = vpop.f32.mrf.mxu0
      %v655 = vadd.f32 0.0, %v654
      %v656 = vpop.f32.mrf.mxu0
      %657 = vdwg.mxu0
      %658 = vmatpush.bf16.msra.mxu0 %v547
      %659 = vmatpush.bf16.msra.mxu0 %v545
      %660 = vmatpush.bf16.msra.mxu0 %v543
      %661 = vmatpush.bf16.msra.mxu0 %v541
      %662 = vmatpush.bf16.msra.mxu0 %v539
      %663 = vmatpush.bf16.msra.mxu0 %v537
      %664 = vmatpush.bf16.msra.mxu0 %v535
      %665 = vmatpush.bf16.msra.mxu0 %v533
      %666 = vmatmul.bf16.gmra.mxu0 %v318
      %v667 = vpop.f32.mrf.mxu0
      %v668 = vadd.f32 %v655, %v667
      %v669 = vpop.f32.mrf.mxu0
      %670 = vdwg.mxu0
      %671 = vmatpush.bf16.msra.mxu0 %v563
      %672 = vmatpush.bf16.msra.mxu0 %v561
      %673 = vmatpush.bf16.msra.mxu0 %v559
      %674 = vmatpush.bf16.msra.mxu0 %v557
      %675 = vmatpush.bf16.msra.mxu0 %v555
      %676 = vmatpush.bf16.msra.mxu0 %v553
      %677 = vmatpush.bf16.msra.mxu0 %v551
      %678 = vmatpush.bf16.msra.mxu0 %v549
      %679 = vmatmul.bf16.gmra.mxu0 %v319
      %v680 = vpop.f32.mrf.mxu0
      %v681 = vadd.f32 %v668, %v680
      %v682 = vpop.f32.mrf.mxu0
      %683 = vdwg.mxu0
      %684 = vmatpush.bf16.msra.mxu0 %v579
      %685 = vmatpush.bf16.msra.mxu0 %v577
      %686 = vmatpush.bf16.msra.mxu0 %v575
      %687 = vmatpush.bf16.msra.mxu0 %v573
      %688 = vmatpush.bf16.msra.mxu0 %v571
      %689 = vmatpush.bf16.msra.mxu0 %v569
      %690 = vmatpush.bf16.msra.mxu0 %v567
      %691 = vmatpush.bf16.msra.mxu0 %v565
      %692 = vmatmul.bf16.gmra.mxu0 %v320
      %v693 = vpop.f32.mrf.mxu0
      %v694 = vadd.f32 %v681, %v693
      %v695 = vpop.f32.mrf.mxu0
      %696 = vdwg.mxu0
      %697 = vmatpush.bf16.msra.mxu0 %v532
      %698 = vmatpush.bf16.msra.mxu0 %v530
      %699 = vmatpush.bf16.msra.mxu0 %v528
      %700 = vmatpush.bf16.msra.mxu0 %v526
      %701 = vmatpush.bf16.msra.mxu0 %v524
      %702 = vmatpush.bf16.msra.mxu0 %v522
      %703 = vmatpush.bf16.msra.mxu0 %v520
      %704 = vmatpush.bf16.msra.mxu0 %v518
      %705 = vmatmul.bf16.gmra.mxu0 %v317
      %v706 = vpop.f32.mrf.mxu0
      %v707 = vadd.f32 0.0, %v706
      %v708 = vpop.f32.mrf.mxu0
      %709 = vdwg.mxu0
      %710 = vmatpush.bf16.msra.mxu0 %v548
      %711 = vmatpush.bf16.msra.mxu0 %v546
      %712 = vmatpush.bf16.msra.mxu0 %v544
      %713 = vmatpush.bf16.msra.mxu0 %v542
      %714 = vmatpush.bf16.msra.mxu0 %v540
      %715 = vmatpush.bf16.msra.mxu0 %v538
      %716 = vmatpush.bf16.msra.mxu0 %v536
      %717 = vmatpush.bf16.msra.mxu0 %v534
      %718 = vmatmul.bf16.gmra.mxu0 %v318
      %v719 = vpop.f32.mrf.mxu0
      %v720 = vadd.f32 %v707, %v719
      %v721 = vpop.f32.mrf.mxu0
      %722 = vdwg.mxu0
      %723 = vmatpush.bf16.msra.mxu0 %v564
      %724 = vmatpush.bf16.msra.mxu0 %v562
      %725 = vmatpush.bf16.msra.mxu0 %v560
      %726 = vmatpush.bf16.msra.mxu0 %v558
      %727 = vmatpush.bf16.msra.mxu0 %v556
      %728 = vmatpush.bf16.msra.mxu0 %v554
      %729 = vmatpush.bf16.msra.mxu0 %v552
      %730 = vmatpush.bf16.msra.mxu0 %v550
      %731 = vmatmul.bf16.gmra.mxu0 %v319
      %v732 = vpop.f32.mrf.mxu0
      %v733 = vadd.f32 %v720, %v732
      %v734 = vpop.f32.mrf.mxu0
      %735 = vdwg.mxu0
      %736 = vmatpush.bf16.msra.mxu0 %v580
      %737 = vmatpush.bf16.msra.mxu0 %v578
      %738 = vmatpush.bf16.msra.mxu0 %v576
      %739 = vmatpush.bf16.msra.mxu0 %v574
      %740 = vmatpush.bf16.msra.mxu0 %v572
      %741 = vmatpush.bf16.msra.mxu0 %v570
      %742 = vmatpush.bf16.msra.mxu0 %v568
      %743 = vmatpush.bf16.msra.mxu0 %v566
      %744 = vmatmul.bf16.gmra.mxu0 %v320
      %v745 = vpop.f32.mrf.mxu0
      %v746 = vadd.f32 %v733, %v745
      %v747 = vpop.f32.mrf.mxu0
      %748 = vdwg.mxu0
      %v749 = vadd.f32 %v243, %v694
      %v750 = vadd.f32 %v244, %v746
      %751 = vst [vmem:[#allocation2] sm:$0xff] %v749
      %752 = vst [vmem:[#allocation2 + $0x8] sm:$0xff] %v750
      %p753 = scmp.eq.s32.totalorder %s16, 3
      // Predicated region
      $region45: #{inception_forward.3} parent=39 // pred_check
        %p754 = pneg %p753
      $region46: #{inception_forward.3} parent=39 // pred_check_branch
        %756 = sbr.rel (%p754) target = $region48
      $region47: #{inception_forward.3} parent=39 // pred_region
        %v757 = vld [vmem:[#allocation2] sm:$0xff]
        %v758 = vld [vmem:[#allocation2 + $0x8] sm:$0xff]
        %v759 = vld [vmem:[%s2] sm:$0x3]
        %v761 = vperm.slane %v759, 0
        %v762 = vperm.slane %v759, 1
        %v765 = vadd.f32 %v757, %v761
        %v766 = vadd.f32 %v758, %v762
        %v767 = vld [vmem:[%s3] sm:$0xff]
        %v768 = vld [vmem:[%s3 + $0x8] sm:$0xff]
        %v769 = vld [vmem:[%s3 + $0x10] sm:$0xff]
        %v770 = vld [vmem:[%s3 + $0x18] sm:$0xff]
        %v771 = vld [vmem:[%s3 + $0x20] sm:$0xff]
        %v772 = vld [vmem:[%s3 + $0x28] sm:$0xff]
        %v773 = vld [vmem:[%s3 + $0x30] sm:$0xff]
        %v774 = vld [vmem:[%s3 + $0x38] sm:$0xff]
        %v775 = vld [vmem:[%s3 + $0x40] sm:$0xff]
        %v776 = vld [vmem:[%s3 + $0x48] sm:$0xff]
        %v777 = vld [vmem:[%s3 + $0x50] sm:$0xff]
        %v778 = vld [vmem:[%s3 + $0x58] sm:$0xff]
        %v779 = vld [vmem:[%s3 + $0x60] sm:$0xff]
        %v780 = vld [vmem:[%s3 + $0x68] sm:$0xff]
        %v781 = vld [vmem:[%s3 + $0x70] sm:$0xff]
        %v782 = vld [vmem:[%s3 + $0x78] sm:$0xff]
        %v783 = vld [vmem:[%s3 + $0x80] sm:$0xff]
        %v784 = vld [vmem:[%s3 + $0x88] sm:$0xff]
        %v785 = vld [vmem:[%s3 + $0x90] sm:$0xff]
        %v786 = vld [vmem:[%s3 + $0x98] sm:$0xff]
        %v787 = vld [vmem:[%s3 + $0xa0] sm:$0xff]
        %v788 = vld [vmem:[%s3 + $0xa8] sm:$0xff]
        %v789 = vld [vmem:[%s3 + $0xb0] sm:$0xff]
        %v790 = vld [vmem:[%s3 + $0xb8] sm:$0xff]
        %v791 = vld [vmem:[%s3 + $0xc0] sm:$0xff]
        %v792 = vld [vmem:[%s3 + $0xc8] sm:$0xff]
        %v793 = vld [vmem:[%s3 + $0xd0] sm:$0xff]
        %v794 = vld [vmem:[%s3 + $0xd8] sm:$0xff]
        %v795 = vld [vmem:[%s3 + $0xe0] sm:$0xff]
        %v796 = vld [vmem:[%s3 + $0xe8] sm:$0xff]
        %v797 = vld [vmem:[%s3 + $0xf0] sm:$0xff]
        %v798 = vld [vmem:[%s3 + $0xf8] sm:$0xff]
        %v799 = vld [vmem:[%s4] sm:$0x1]
        %v801 = vperm.slane %v799, 0
        %803 = vmatpush.msra.mxu0 %v782
        %804 = vmatpush.msra.mxu0 %v781
        %805 = vmatpush.msra.mxu0 %v780
        %806 = vmatpush.msra.mxu0 %v779
        %807 = vmatpush.msra.mxu0 %v778
        %808 = vmatpush.msra.mxu0 %v777
        %809 = vmatpush.msra.mxu0 %v776
        %810 = vmatpush.msra.mxu0 %v775
        %811 = vmatpush.msra.mxu0 %v774
        %812 = vmatpush.msra.mxu0 %v773
        %813 = vmatpush.msra.mxu0 %v772
        %814 = vmatpush.msra.mxu0 %v771
        %815 = vmatpush.msra.mxu0 %v770
        %816 = vmatpush.msra.mxu0 %v769
        %817 = vmatpush.msra.mxu0 %v768
        %818 = vmatpush.msra.mxu0 %v767
        %819 = vmatmul.f32.gmra.mxu0 %v765
        %v820 = vpop.f32.mrf.mxu0
        %v821 = vadd.f32 %v801, %v820
        %822 = vdwg.mxu0
        %823 = vmatpush.msra.mxu0 %v798
        %824 = vmatpush.msra.mxu0 %v797
        %825 = vmatpush.msra.mxu0 %v796
        %826 = vmatpush.msra.mxu0 %v795
        %827 = vmatpush.msra.mxu0 %v794
        %828 = vmatpush.msra.mxu0 %v793
        %829 = vmatpush.msra.mxu0 %v792
        %830 = vmatpush.msra.mxu0 %v791
        %831 = vmatpush.msra.mxu0 %v790
        %832 = vmatpush.msra.mxu0 %v789
        %833 = vmatpush.msra.mxu0 %v788
        %834 = vmatpush.msra.mxu0 %v787
        %835 = vmatpush.msra.mxu0 %v786
        %836 = vmatpush.msra.mxu0 %v785
        %837 = vmatpush.msra.mxu0 %v784
        %838 = vmatpush.msra.mxu0 %v783
        %839 = vmatmul.f32.gmra.mxu0 %v766
        %v840 = vpop.f32.mrf.mxu0
        %v841 = vadd.f32 %v821, %v840
        %842 = vdwg.mxu0
        %843 = vst [vmem:[%s5] sm:$0xff] %v841
      $region48: #{inception_forward.3} parent=39 // pred_fallthru
        _
      // Predicated region
      $region49: #{inception_forward.3} parent=39 // pred_check
        %p844 = pneg %p144
      $region50: #{inception_forward.3} parent=39 // pred_check_branch
        %846 = sbr.rel (%p844) target = $region52
      $region51: #{inception_forward.3} parent=39 // pred_region
        _
      $region52: #{inception_forward.3} parent=39 // pred_fallthru
        _
      // Predicated region
      $region53: #{inception_forward.3} parent=39 // pred_check
        %p847 = pneg %p144
      $region54: #{inception_forward.3} parent=39 // pred_check_branch
        %849 = sbr.rel (%p847) target = $region56
      $region55: #{inception_forward.3} parent=39 // pred_region
        _
      $region56: #{inception_forward.3} parent=39 // pred_fallthru
        _
    $region40: #{inception_forward.3} parent=5 // pred_fallthru
      _
    %p850 = scmp.le.s32.totalorder 2, %s11
    // Predicated region
    $region57: #{inception_forward.3} parent=5 // pred_check
      %p851 = pneg %p850
    $region58: #{inception_forward.3} parent=5 // pred_check_branch
      %853 = sbr.rel (%p851) target = $region60
    $region59: #{inception_forward.3} parent=5 // pred_region
      %s854 = ssub.s32 %s11, 2
    $region60: #{inception_forward.3} parent=5 // pred_fallthru
      _
  $region6: #{inception_forward.3} parent=0 // loop_footer
    %s15 = sadd.s32 1, %s11
  $region7: #{inception_forward.3} parent=0 // loop_footer_branch
    %10 = sbr.rel target = $region3
  $region8: #{inception_forward.3} parent=0 // loop_exit
    _

</llo_original>
